<compile_context>
chip_gen: v7x
topology: tpu7x:2x2x1
jax: 0.10.0
libtpu: 0.0.40
codegen_flags: <defaults>
</compile_context>

<pallas_src>
import functools

import jax
import jax.numpy as jnp
from jax.experimental import pallas as pl
from jax.experimental.pallas import tpu as pltpu


def _round_up(x, m):
    return ((x + m - 1) // m) * m


# ----------------------------------------------------------------------------
# Fused Linear (x @ W + b) + LogSoftmax over the class (vocab) dim.
#
#   grid = (row_tiles, vocab_tiles)          -- reduction (vocab) axis LAST
#   x_ref : (rt, H)       bf16  resident across the vocab loop   (idx (i, 0))
#   w_ref : (H, tn)       bf16  streamed / double-buffered        (idx (0, j))
#   b_ref : (1, tn)       f32
#   o_ref : (nv, rt, tn)        resident output block; vocab tile index is the
#                               LEADING (untiled) dim -> plain dynamic store
#   m/l   : (rt, 1) f32 scratch -- online running max / sum-exp carry so the
#                               log-sum-exp is exact across all vocab tiles.
# ----------------------------------------------------------------------------
def _linear_logsoftmax_kernel(x_ref, w_ref, b_ref, o_ref, m_ref, l_ref):
    j = pl.program_id(1)
    nv = pl.num_programs(1)

    @pl.when(j == 0)
    def _init():
        m_ref[...] = jnp.full(m_ref.shape, -jnp.inf, m_ref.dtype)
        l_ref[...] = jnp.zeros(l_ref.shape, l_ref.dtype)

    # bf16 MXU matmul, f32 accumulation; bias added post-accumulation.
    logits = jnp.dot(x_ref[...], w_ref[...],
                     preferred_element_type=jnp.float32) + b_ref[...]

    # Online softmax statistics carried across vocab tiles (NOT per-tile max).
    m_prev = m_ref[...]
    m_new = jnp.maximum(m_prev, jnp.max(logits, axis=-1, keepdims=True))
    l_ref[...] = (l_ref[...] * jnp.exp(m_prev - m_new)
                  + jnp.sum(jnp.exp(logits - m_new), axis=-1, keepdims=True))
    m_ref[...] = m_new

    # Stash raw logits for this vocab tile in the resident output block.
    o_ref[j] = logits.astype(o_ref.dtype)

    @pl.when(j == nv - 1)
    def _finalize():
        lse = m_ref[...] + jnp.log(l_ref[...])                 # (rt, 1)
        o_ref[...] = (o_ref[...].astype(jnp.float32) - lse).astype(o_ref.dtype)


def linear_logsoftmax(x2d, w, b, *, row_tile=256, vocab_tile=512,
                      out_dtype=jnp.float32):
    """x2d: (R, H), w: (H, C), b: (C,) -> (R, C) log-probs over C.

    Rows are padded up to a multiple of the row tile (128 on v5e, 256 on
    v6e/v7x is a good choice); the class dim is padded up to a multiple of the
    vocab tile with a -1e30 bias so padded classes vanish from the softmax.
    Set out_dtype=jnp.bfloat16 to halve the (R, C) output writeback.
    """
    R, H = x2d.shape
    V = w.shape[1]

    tn = min(vocab_tile, _round_up(V, 128))
    V_pad = _round_up(V, tn)
    nv = V_pad // tn
    rt = min(row_tile, _round_up(R, 8))
    R_pad = _round_up(R, rt)

    # Pad + cast operands. bf16 feeds the MXU natively on v5e/v6e/v7x and
    # halves weight / activation HBM traffic; accumulation stays f32.
    x_p = jnp.zeros((R_pad, H), jnp.bfloat16).at[:R, :].set(
        x2d.astype(jnp.bfloat16))
    w_p = jnp.zeros((H, V_pad), jnp.bfloat16).at[:, :V].set(
        w.astype(jnp.bfloat16))
    # Padded vocab columns get a very negative bias -> contribute 0 to the lse.
    b_p = jnp.full((1, V_pad), -1e30, jnp.float32).at[0, :V].set(
        b.astype(jnp.float32))

    out3 = pl.pallas_call(
        _linear_logsoftmax_kernel,
        out_shape=jax.ShapeDtypeStruct((nv, R_pad, tn), out_dtype),
        grid_spec=pltpu.PrefetchScalarGridSpec(
            num_scalar_prefetch=0,
            grid=(R_pad // rt, nv),
            in_specs=[
                # x row tile: resident across the vocab loop (one DMA per i)
                pl.BlockSpec((rt, H), lambda i, j: (i, 0)),
                # weight vocab tile: streamed / double-buffered behind the MXU
                pl.BlockSpec((H, tn), lambda i, j: (0, j)),
                pl.BlockSpec((1, tn), lambda i, j: (0, j)),
            ],
            # Output block resident across the vocab (reduction) axis.
            out_specs=pl.BlockSpec((nv, rt, tn), lambda i, j: (0, i, 0)),
            scratch_shapes=[
                pltpu.VMEM((rt, 1), jnp.float32),   # running max
                pltpu.VMEM((rt, 1), jnp.float32),   # running sum-exp
            ],
        ),
        compiler_params=pltpu.CompilerParams(
            # rows: parallel (megacore shards it on v7x); vocab: carried
            # reduction -> arbitrary, and it is the last grid axis.
            dimension_semantics=("parallel", "arbitrary"),
            vmem_limit_bytes=48 * 1024 * 1024,
        ),
    )(x_p, w_p, b_p)

    # (nv, R_pad, tn) -> (R_pad, V_pad); drop row/vocab padding.
    # TODO(synk): if only the target-token log-prob is needed (NLL loss), fuse
    # the gather into the kernel epilogue and skip this full (R, V) slab.
    out = jnp.transpose(out3, (1, 0, 2)).reshape(R_pad, V_pad)
    return out[:R, :V]


# ----------------------------------------------------------------------------
# BERTLM forward
# ----------------------------------------------------------------------------
def bertlm_forward(params, token_ids, segment_label):
    B, S = token_ids.shape
    H = params["tok_emb"].shape[1]
    V = params["mlm_w"].shape[1]

    # --- "bert(x, segment_label)" stand-in (plain-JAX glue): token + segment
    # + position embeddings, deterministic.  Output: (B, S, H) float32.
    # TODO(synk): BERT encoder sub-module not provided in the module source.
    x = (params["tok_emb"][token_ids]
         + params["seg_emb"][segment_label]
         + params["pos_emb"][None, :S, :])

    # --- NSP head: linear(x[:, 0]) -> log_softmax over 2 classes.
    # Plain XLA on purpose: a (B, 2) Pallas output uses 2/128 lanes (masked
    # partial stores) and the whole head is a few kFLOPs -- dispatch dominates.
    cls = x[:, 0, :]                                          # (B, H)
    nsp_logits = jnp.dot(cls, params["nsp_w"]) + params["nsp_b"]
    nsp = jax.nn.log_softmax(nsp_logits, axis=-1)

    # --- MLM head: Pallas fused linear + log_softmax over vocab, per token.
    x_flat = x.reshape(B * S, H)
    mlm_flat = linear_logsoftmax(x_flat, params["mlm_w"], params["mlm_b"],
                                 row_tile=256, vocab_tile=512)
    mlm = mlm_flat.reshape(B, S, V)
    return nsp, mlm


def _reference_forward(params, token_ids, segment_label):
    """Pure-JAX (f32) reference for correctness checking."""
    S = token_ids.shape[1]
    x = (params["tok_emb"][token_ids]
         + params["seg_emb"][segment_label]
         + params["pos_emb"][None, :S, :])
    nsp = jax.nn.log_softmax(x[:, 0, :] @ params["nsp_w"] + params["nsp_b"],
                             axis=-1)
    mlm = jax.nn.log_softmax(x @ params["mlm_w"] + params["mlm_b"], axis=-1)
    return nsp, mlm


def init_params(key, vocab_size, hidden, max_seq):
    ks = jax.random.split(key, 7)
    scale = 0.02
    return {
        "tok_emb": scale * jax.random.normal(ks[0], (vocab_size, hidden), jnp.float32),
        "seg_emb": scale * jax.random.normal(ks[1], (3, hidden), jnp.float32),
        "pos_emb": scale * jax.random.normal(ks[2], (max_seq, hidden), jnp.float32),
        "nsp_w": scale * jax.random.normal(ks[3], (hidden, 2), jnp.float32),
        "nsp_b": jnp.zeros((2,), jnp.float32),
        "mlm_w": scale * jax.random.normal(ks[4], (hidden, vocab_size), jnp.float32),
        "mlm_b": jnp.zeros((vocab_size,), jnp.float32),
    }


if __name__ == "__main__":
    B, S, H, V = 2, 8, 32, 128

    key = jax.random.PRNGKey(0)
    k_param, k_tok, k_seg = jax.random.split(key, 3)

    params = init_params(k_param, vocab_size=V, hidden=H, max_seq=S)
    token_ids = jax.random.randint(k_tok, (B, S), 0, V, dtype=jnp.int32)
    segment_label = jax.random.randint(k_seg, (B, S), 0, 2, dtype=jnp.int32)

    nsp, mlm = jax.jit(bertlm_forward)(params, token_ids, segment_label)
    jax.block_until_ready((nsp, mlm))

    assert nsp.shape == (B, 2)
    assert mlm.shape == (B, S, V)

    # log-softmax rows sum (in prob space) to ~1
    assert jnp.allclose(jnp.sum(jnp.exp(nsp), axis=-1), 1.0, atol=1e-4)
    assert jnp.allclose(jnp.sum(jnp.exp(mlm), axis=-1), 1.0, atol=1e-4)

    # match the pure-f32 reference (bf16 matmul inputs -> loose tolerance)
    nsp_ref, mlm_ref = jax.jit(_reference_forward)(params, token_ids, segment_label)
    assert jnp.allclose(nsp, nsp_ref, atol=1e-4)
    assert jnp.allclose(mlm, mlm_ref, atol=2e-2)

    print("KERNEL_OK")
</pallas_src>

<mosaic_0001>
module attributes {stable_mosaic.version = 11 : i64} {
  func.func @_linear_logsoftmax_kernel(%arg0: i32, %arg1: i32, %arg2: memref<16x32xbf16, #tpu.memory_space<vmem>>, %arg3: memref<32x128xbf16, #tpu.memory_space<vmem>>, %arg4: memref<1x128xf32, #tpu.memory_space<vmem>>, %arg5: memref<1x16x128xf32, #tpu.memory_space<vmem>>, %arg6: memref<16x1xf32, #tpu.memory_space<vmem>>, %arg7: memref<16x1xf32, #tpu.memory_space<vmem>>) attributes {dimension_semantics = [#tpu.dimension_semantics<parallel>, #tpu.dimension_semantics<arbitrary>], iteration_bounds = array<i64: 1, 1>, scalar_prefetch = 0 : i64, scratch_operands = 2 : i64, tpu.core_type = #tpu.core_type<tc>, window_params = [{transform_indices = @transform_0, window_bounds = array<i64: 16, 32>}, {transform_indices = @transform_1, window_bounds = array<i64: 32, 128>}, {transform_indices = @transform_2, window_bounds = array<i64: 1, 128>}, {transform_indices = @transform_3, window_bounds = array<i64: 1, 16, 128>}]} {
    %c0_i32 = arith.constant 0 : i32
    %0 = arith.cmpi eq, %arg1, %c0_i32 : i32
    %1 = arith.extui %0 : i1 to i32
    %c0_i32_0 = arith.constant 0 : i32
    %2 = arith.cmpi ne, %1, %c0_i32_0 : i32
    scf.if %2 {
      %cst_20 = arith.constant 0xFF800000 : f32
      %32 = vector.broadcast %cst_20 : f32 to vector<16x1xf32>
      %c0_21 = arith.constant 0 : index
      %c0_22 = arith.constant 0 : index
      %33 = vector.load %arg6[%c0_21, %c0_22] : memref<16x1xf32, #tpu.memory_space<vmem>>, vector<16x1xf32>
      tpu.vector_store %arg6[%c0_21, %c0_22], %32 {strides = array<i32>} : memref<16x1xf32, #tpu.memory_space<vmem>>, vector<16x1xf32>,
      %cst_23 = arith.constant 0.000000e+00 : f32
      %34 = vector.broadcast %cst_23 : f32 to vector<16x1xf32>
      %c0_24 = arith.constant 0 : index
      %c0_25 = arith.constant 0 : index
      %35 = vector.load %arg7[%c0_24, %c0_25] : memref<16x1xf32, #tpu.memory_space<vmem>>, vector<16x1xf32>
      tpu.vector_store %arg7[%c0_24, %c0_25], %34 {strides = array<i32>} : memref<16x1xf32, #tpu.memory_space<vmem>>, vector<16x1xf32>,
    } else {
    }
    %c0 = arith.constant 0 : index
    %c0_1 = arith.constant 0 : index
    %3 = vector.load %arg2[%c0, %c0_1] : memref<16x32xbf16, #tpu.memory_space<vmem>>, vector<16x32xbf16>
    %c0_2 = arith.constant 0 : index
    %c0_3 = arith.constant 0 : index
    %4 = vector.load %arg3[%c0_2, %c0_3] : memref<32x128xbf16, #tpu.memory_space<vmem>>, vector<32x128xbf16>
    %cst = arith.constant dense<0.000000e+00> : vector<16x128xf32>
    %5 = tpu.matmul %3, %4, %cst {dimension_numbers = #tpu.dot_dimension_numbers<[1], [0], [0], [1], [0, 0, 1, 1], [], []>} : vector<16x32xbf16>, vector<32x128xbf16>, vector<16x128xf32> -> vector<16x128xf32>
    %c0_4 = arith.constant 0 : index
    %c0_5 = arith.constant 0 : index
    %6 = vector.load %arg4[%c0_4, %c0_5] : memref<1x128xf32, #tpu.memory_space<vmem>>, vector<1x128xf32>
    %7 = vector.broadcast %6 : vector<1x128xf32> to vector<16x128xf32>
    %8 = arith.addf %5, %7 : vector<16x128xf32>
    %c0_6 = arith.constant 0 : index
    %c0_7 = arith.constant 0 : index
    %9 = vector.load %arg6[%c0_6, %c0_7] : memref<16x1xf32, #tpu.memory_space<vmem>>, vector<16x1xf32>
    %cst_8 = arith.constant dense<0xFF800000> : vector<16xf32>
    %10 = vector.multi_reduction <maximumf>, %8, %cst_8 [1] : vector<16x128xf32> to vector<16xf32>
    %11 = vector.shape_cast %10 : vector<16xf32> to vector<16x1xf32>
    %12 = arith.maximumf %9, %11 : vector<16x1xf32>
    %c0_9 = arith.constant 0 : index
    %c0_10 = arith.constant 0 : index
    %13 = vector.load %arg7[%c0_9, %c0_10] : memref<16x1xf32, #tpu.memory_space<vmem>>, vector<16x1xf32>
    %14 = arith.subf %9, %12 : vector<16x1xf32>
    %15 = math.exp %14 : vector<16x1xf32>
    %16 = arith.mulf %13, %15 : vector<16x1xf32>
    %17 = vector.broadcast %12 : vector<16x1xf32> to vector<16x128xf32>
    %18 = arith.subf %8, %17 : vector<16x128xf32>
    %19 = math.exp %18 : vector<16x128xf32>
    %cst_11 = arith.constant dense<0.000000e+00> : vector<16xf32>
    %20 = vector.multi_reduction <add>, %19, %cst_11 [1] : vector<16x128xf32> to vector<16xf32>
    %21 = vector.shape_cast %20 : vector<16xf32> to vector<16x1xf32>
    %22 = arith.addf %16, %21 : vector<16x1xf32>
    %c0_12 = arith.constant 0 : index
    %c0_13 = arith.constant 0 : index
    %23 = vector.load %arg7[%c0_12, %c0_13] : memref<16x1xf32, #tpu.memory_space<vmem>>, vector<16x1xf32>
    tpu.vector_store %arg7[%c0_12, %c0_13], %22 {strides = array<i32>} : memref<16x1xf32, #tpu.memory_space<vmem>>, vector<16x1xf32>,
    %c0_14 = arith.constant 0 : index
    %c0_15 = arith.constant 0 : index
    %24 = vector.load %arg6[%c0_14, %c0_15] : memref<16x1xf32, #tpu.memory_space<vmem>>, vector<16x1xf32>
    tpu.vector_store %arg6[%c0_14, %c0_15], %12 {strides = array<i32>} : memref<16x1xf32, #tpu.memory_space<vmem>>, vector<16x1xf32>,
    %25 = arith.index_cast %arg1 : i32 to index
    %c0_16 = arith.constant 0 : index
    %c0_17 = arith.constant 0 : index
    %26 = vector.load %arg5[%25, %c0_16, %c0_17] : memref<1x16x128xf32, #tpu.memory_space<vmem>>, vector<1x16x128xf32>
    %27 = vector.shape_cast %26 : vector<1x16x128xf32> to vector<16x128xf32>
    %28 = vector.shape_cast %8 : vector<16x128xf32> to vector<1x16x128xf32>
    tpu.vector_store %arg5[%25, %c0_16, %c0_17], %28 {strides = array<i32>} : memref<1x16x128xf32, #tpu.memory_space<vmem>>, vector<1x16x128xf32>,
    %c0_i32_18 = arith.constant 0 : i32
    %29 = arith.cmpi eq, %arg1, %c0_i32_18 : i32
    %30 = arith.extui %29 : i1 to i32
    %c0_i32_19 = arith.constant 0 : i32
    %31 = arith.cmpi ne, %30, %c0_i32_19 : i32
    scf.if %31 {
      %c0_20 = arith.constant 0 : index
      %c0_21 = arith.constant 0 : index
      %32 = vector.load %arg6[%c0_20, %c0_21] : memref<16x1xf32, #tpu.memory_space<vmem>>, vector<16x1xf32>
      %c0_22 = arith.constant 0 : index
      %c0_23 = arith.constant 0 : index
      %33 = vector.load %arg7[%c0_22, %c0_23] : memref<16x1xf32, #tpu.memory_space<vmem>>, vector<16x1xf32>
      %34 = math.log %33 : vector<16x1xf32>
      %35 = arith.addf %32, %34 : vector<16x1xf32>
      %c0_24 = arith.constant 0 : index
      %c0_25 = arith.constant 0 : index
      %c0_26 = arith.constant 0 : index
      %36 = vector.load %arg5[%c0_24, %c0_25, %c0_26] : memref<1x16x128xf32, #tpu.memory_space<vmem>>, vector<1x16x128xf32>
      %37 = vector.shape_cast %35 : vector<16x1xf32> to vector<1x16x1xf32>
      %38 = vector.broadcast %37 : vector<1x16x1xf32> to vector<1x16x128xf32>
      %39 = arith.subf %36, %38 : vector<1x16x128xf32>
      %c0_27 = arith.constant 0 : index
      %c0_28 = arith.constant 0 : index
      %c0_29 = arith.constant 0 : index
      %40 = vector.load %arg5[%c0_27, %c0_28, %c0_29] : memref<1x16x128xf32, #tpu.memory_space<vmem>>, vector<1x16x128xf32>
      tpu.vector_store %arg5[%c0_27, %c0_28, %c0_29], %39 {strides = array<i32>} : memref<1x16x128xf32, #tpu.memory_space<vmem>>, vector<1x16x128xf32>,
    } else {
    }
    return
  }
  func.func @transform_0(%arg0: i32, %arg1: i32) -> (i32, i32) {
    %c0_i32 = arith.constant 0 : i32
    %c0_i32_0 = arith.constant 0 : i32
    return %arg0, %c0_i32 : i32, i32
  }
  func.func @transform_1(%arg0: i32, %arg1: i32) -> (i32, i32) {
    %c0_i32 = arith.constant 0 : i32
    %c0_i32_0 = arith.constant 0 : i32
    return %c0_i32, %arg1 : i32, i32
  }
  func.func @transform_2(%arg0: i32, %arg1: i32) -> (i32, i32) {
    %c0_i32 = arith.constant 0 : i32
    %c0_i32_0 = arith.constant 0 : i32
    return %c0_i32, %arg1 : i32, i32
  }
  func.func @transform_3(%arg0: i32, %arg1: i32) -> (i32, i32, i32) {
    %c0_i32 = arith.constant 0 : i32
    %c0_i32_0 = arith.constant 0 : i32
    %c0_i32_1 = arith.constant 0 : i32
    return %c0_i32, %arg0, %c0_i32_0 : i32, i32, i32
  }
}

</mosaic_0001>

<llo_original>
// kernel: bertlm_forward.1
$region0: #{bertlm_forward.1}
  #allocation0 [shape = 'u32[]', space=smem, size = 0x4, offset = 0x4, fixed_abs, tag = 'smem constant byte address 0x4 - core index']
  #allocation1 [shape = 'u32[144,128]{1,0:T(1,128)}', space=vmem, size = 0x12000, scoped, tag = 'internal scratch']
  #allocation2 [shape = 'f32[16,1]{1,0:T(8,128)}', space=vmem, size = 0x2000, scoped, tag = 'scratch operand']
  #allocation3 [shape = 'f32[16,1]{1,0:T(8,128)}', space=vmem, size = 0x2000, scoped, tag = 'scratch operand']
  %s0 = inlined_call_operand.vmem [shape: bf16[16,32], index: 0, kind: input, shape index: {}]
  %s1 = inlined_call_operand.vmem [shape: bf16[32,128], index: 1, kind: input, shape index: {}]
  %s2 = inlined_call_operand.vmem [shape: f32[1,128], index: 2, kind: input, shape index: {}]
  %s3 = inlined_call_operand.hbm [shape: f32[1,16,128], index: 3, kind: output, shape index: {}]
  %s4 = sld [smem:[#allocation0]]
  $region30: #{bertlm_forward.1} parent=0
    _
  %s6 = ssub.s32 1, %s4
  %s7 = scalar_select 0, %s6, %s4
  $region1: #{bertlm_forward.1} parent=0
    #allocation4 [shape = 'u8[8192]{0}', space=vmem, size = 0x2000, scoped, tag = 'output window, operand 0, single buffered']
    #allocation5 [shape = 's32[1]{0}', space=sflag, size = 0x4, scoped, tag = 'scoped memory for bertlm_forward.1']
    %8 = vsyncpa [#allocation5], 0
    // Predicated region
    $region2: #{bertlm_forward.1} parent=1 // pred_check
      _
    $region3: #{bertlm_forward.1} parent=1 // pred_check_branch
      %10 = sbr.rel (0) target = $region5
    $region4: #{bertlm_forward.1} parent=1 // pred_region
      _
    $region5: #{bertlm_forward.1} parent=1 // pred_fallthru
      _
    // Predicated region
    $region6: #{bertlm_forward.1} parent=1 // pred_check
      _
    $region7: #{bertlm_forward.1} parent=1 // pred_check_branch
      %12 = sbr.rel (0) target = $region9
    $region8: #{bertlm_forward.1} parent=1 // pred_region
      _
    $region9: #{bertlm_forward.1} parent=1 // pred_fallthru
      _
    // Predicated region
    $region10: #{bertlm_forward.1} parent=1 // pred_check
      _
    $region11: #{bertlm_forward.1} parent=1 // pred_check_branch
      %14 = sbr.rel (0) target = $region13
    $region12: #{bertlm_forward.1} parent=1 // pred_region
      _
    $region13: #{bertlm_forward.1} parent=1 // pred_fallthru
      _
    %p16 = scmp.eq.s32.totalorder 0, 0
    // Predicated region
    $region14: #{bertlm_forward.1} parent=1 // pred_check
      %p17 = pneg %p16
    $region15: #{bertlm_forward.1} parent=1 // pred_check_branch
      %19 = sbr.rel (%p17) target = $region17
    $region16: #{bertlm_forward.1} parent=1 // pred_region
      %vm20 = vcmask 7168
      %21 = vst.msk [vmem:[#allocation2] sm:$0xff] %vm20, -inf
      %22 = vst.msk [vmem:[#allocation2 + $0x8] sm:$0xff] %vm20, -inf
      %23 = vst.msk [vmem:[#allocation3] sm:$0xff] %vm20, 0.0
      %24 = vst.msk [vmem:[#allocation3 + $0x8] sm:$0xff] %vm20, 0.0
    $region17: #{bertlm_forward.1} parent=1 // pred_fallthru
      _
    %v25 = vld [vmem:[%s0] sm:$0xf]
    %v26 = vld [vmem:[%s0 + $0x4] sm:$0xf]
    %v27 = vld [vmem:[%s1] sm:$0xf]
    %v28 = vld [vmem:[%s1 + $0x4] sm:$0xf]
    %v29 = vld [vmem:[%s1 + $0x8] sm:$0xf]
    %v30 = vld [vmem:[%s1 + $0xc] sm:$0xf]
    %v31 = vld [vmem:[%s2] sm:$0x1]
    %v33 = vlaneseq
    %v34 = vshrl.u32 %v33, 7
    %v35 = vsub.s32 0, %v34
    %v36 = vrot.slane %v31, %v35
    %v40 = vunpack.c.l.b16 %v25
    %v41 = vunpack.c.l.b16 %v26
    %v42 = vpack.c.b16 %v41, %v40
    %v47 = vunpack.c.l.b16 %v27
    %v48 = vunpack.c.l.b16 %v28
    %v49 = vunpack.c.l.b16 %v29
    %v50 = vunpack.c.l.b16 %v30
    %v51 = vpack.c.b16 %v48, %v47
    %v52 = vpack.c.b16 %v50, %v49
    %vm55 = vcmask 261120
    %v57 = vsel %vm55, %v42, 0
    %59 = vmatprep.subr.bf16.mxu0 0
    %60 = vmatpush1.bf16.msra.mxu0 %v51
    %61 = vmatprep.subr.bf16.mxu0 0
    %62 = vmatpush1.bf16.msra.mxu0 %v52
    %63 = vmatprep.subr.bf16.mxu0 0
    %64 = vmatpush1.bf16.msra.mxu0 0
    %65 = vmatprep.subr.bf16.mxu0 0
    %66 = vmatpush1.bf16.msra.mxu0 0
    %67 = vmatprep.subr.bf16.mxu0 0
    %68 = vmatpush1.bf16.msra.mxu0 0
    %69 = vmatprep.subr.bf16.mxu0 0
    %70 = vmatpush1.bf16.msra.mxu0 0
    %71 = vmatprep.subr.bf16.mxu0 0
    %72 = vmatpush1.bf16.msra.mxu0 0
    %73 = vmatprep.subr.bf16.mxu0 0
    %74 = vmatpush1.bf16.msra.mxu0 0
    %75 = vmatprep.subr.bf16.mxu0 0
    %76 = vmatpush1.bf16.msra.mxu0 0
    %77 = vmatprep.subr.bf16.mxu0 0
    %78 = vmatpush1.bf16.msra.mxu0 0
    %79 = vmatprep.subr.bf16.mxu0 0
    %80 = vmatpush1.bf16.msra.mxu0 0
    %81 = vmatprep.subr.bf16.mxu0 0
    %82 = vmatpush1.bf16.msra.mxu0 0
    %83 = vmatprep.subr.bf16.mxu0 0
    %84 = vmatpush1.bf16.msra.mxu0 0
    %85 = vmatprep.subr.bf16.mxu0 0
    %86 = vmatpush1.bf16.msra.mxu0 0
    %87 = vmatprep.subr.bf16.mxu0 0
    %88 = vmatpush1.bf16.msra.mxu0 0
    %89 = vmatprep.subr.bf16.mxu0 0
    %90 = vmatpush1.bf16.msra.mxu0 0
    %91 = vmatprep.mubr.bf16.mxu0 0
    %92 = vmatmul.mubr.bf16.gmra.mrb[0].mxu0 %v57
    %v93 = vpop.f32.mrb[0].mxu0
    %v94 = vadd.f32 %v36, %v93
    %v95 = vpop.f32.mrb[0].mxu0
    %v96 = vpop.f32.mrb[0].mxu0
    %v97 = vadd.f32 %v36, %v96
    %v98 = vpop.f32.mrb[0].mxu0
    %99 = vdwg.mxu0
    %v100 = vld [vmem:[#allocation2] sm:$0xff]
    %v101 = vld [vmem:[#allocation2 + $0x8] sm:$0xff]
    %102 = vmax.xlane.f32.xlu0 %v94
    %v103 = vpop.xlane.xlu0 %102
    %104 = vmax.xlane.f32.xlu0 %v97
    %v105 = vpop.xlane.xlu0 %104
    %v106 = vmax.f32 %v100, %v103
    %v107 = vmax.f32 %v101, %v105
    %v108 = vld [vmem:[#allocation3] sm:$0xff]
    %v109 = vld [vmem:[#allocation3 + $0x8] sm:$0xff]
    %v110 = vsub.f32 %v100, %v106
    %v111 = vsub.f32 %v101, %v107
    %v112 = vmul.f32 %v110, 1.442695
    %v113 = vpow.pop %v112
    %v114 = vmul.f32 %v111, 1.442695
    %v115 = vpow.pop %v114
    %v116 = vmul.f32 %v108, %v113
    %v117 = vmul.f32 %v109, %v115
    %119 = vset.pattern.permute.xlu0 0
    %120 = vperm.xlu0 %119, %v106
    %v121 = vpop.permute.xlu0 %120
    %124 = vset.pattern.permute.xlu0 0
    %125 = vperm.xlu0 %124, %v107
    %v126 = vpop.permute.xlu0 %125
    %v128 = vsub.f32 %v94, %v121
    %v129 = vsub.f32 %v97, %v126
    %v130 = vmul.f32 %v128, 1.442695
    %v131 = vpow.pop %v130
    %v132 = vmul.f32 %v129, 1.442695
    %v133 = vpow.pop %v132
    %134 = vadd.xlane.f32.xlu0 %v131
    %v135 = vpop.xlane.xlu0 %134
    %136 = vadd.xlane.f32.xlu0 %v133
    %v137 = vpop.xlane.xlu0 %136
    %v138 = vadd.f32 %v116, %v135
    %v139 = vadd.f32 %v117, %v137
    %vm140 = vcmask 7168
    %141 = vst.msk [vmem:[#allocation3] sm:$0xff] %vm140, %v138
    %142 = vst.msk [vmem:[#allocation3 + $0x8] sm:$0xff] %vm140, %v139
    %143 = vst.msk [vmem:[#allocation2] sm:$0xff] %vm140, %v106
    %144 = vst.msk [vmem:[#allocation2 + $0x8] sm:$0xff] %vm140, %v107
    %s145 = smul.u32 0, 16
    %s146 = scalar_lea.vmem [#allocation4], %s145
    %147 = vst [vmem:[%s146] sm:$0xff] %v94
    %148 = vst [vmem:[%s146 + $0x8] sm:$0xff] %v97
    // Predicated region
    $region18: #{bertlm_forward.1} parent=1 // pred_check
      %p149 = pneg %p16
    $region19: #{bertlm_forward.1} parent=1 // pred_check_branch
      %151 = sbr.rel (%p149) target = $region21
    $region20: #{bertlm_forward.1} parent=1 // pred_region
      %v152 = vld [vmem:[#allocation2] sm:$0xff]
      %v153 = vld [vmem:[#allocation2 + $0x8] sm:$0xff]
      %v154 = vld [vmem:[#allocation3] sm:$0xff]
      %v155 = vld [vmem:[#allocation3 + $0x8] sm:$0xff]
      %v156 = vlog2.pop %v154
      %v157 = vmul.f32 %v156, 0.6931472
      %v158 = vlog2.pop %v155
      %v159 = vmul.f32 %v158, 0.6931472
      %v160 = vadd.f32 %v152, %v157
      %v161 = vadd.f32 %v153, %v159
      %v162 = vld [vmem:[#allocation4] sm:$0xff]
      %v163 = vld [vmem:[#allocation4 + $0x8] sm:$0xff]
      %165 = vset.pattern.permute.xlu0 0
      %166 = vperm.xlu0 %165, %v160
      %v167 = vpop.permute.xlu0 %166
      %170 = vset.pattern.permute.xlu0 0
      %171 = vperm.xlu0 %170, %v161
      %v172 = vpop.permute.xlu0 %171
      %v174 = vsub.f32 %v162, %v167
      %v175 = vsub.f32 %v163, %v172
      %176 = vst [vmem:[#allocation4] sm:$0xff] %v174
      %177 = vst [vmem:[#allocation4 + $0x8] sm:$0xff] %v175
    $region21: #{bertlm_forward.1} parent=1 // pred_fallthru
      _
    // Predicated region
    $region22: #{bertlm_forward.1} parent=1 // pred_check
      _
    $region23: #{bertlm_forward.1} parent=1 // pred_check_branch
      %179 = sbr.rel (0) target = $region25
    $region24: #{bertlm_forward.1} parent=1 // pred_region
      %s181 = ssub.s32 256, 256
      %182 = vsyncadd [#allocation5], %s181
      %s183 = sshll.u32 [#allocation4], 4
      %s184 = int_to_ptr.vmem [resolvable:$true] %s183
      %189 = dma.vmem_to_hbm [thread:$0]  %s184, 256, %s3, [#allocation5], 128, 128, 8
    $region25: #{bertlm_forward.1} parent=1 // pred_fallthru
      _
    // Predicated region
    $region26: #{bertlm_forward.1} parent=1 // pred_check
      _
    $region27: #{bertlm_forward.1} parent=1 // pred_check_branch
      %191 = sbr.rel (0) target = $region29
    $region28: #{bertlm_forward.1} parent=1 // pred_region
      %192 = dma.done [#allocation5], 256
    $region29: #{bertlm_forward.1} parent=1 // pred_fallthru
      _
    %193 = vsyncpa [#allocation5], 1

</llo_original>
